<compile_context>
chip_gen: v5e
topology: v5e:2x2
jax: 0.10.0
libtpu: 0.0.40
codegen_flags: <defaults>
</compile_context>

<pallas_src>
import math

import jax
import jax.numpy as jnp
import numpy as np
from jax.experimental import pallas as pl
from jax.experimental.pallas import tpu as pltpu

# ----------------------------- problem sizes ---------------------------------
N_NODES = 16     # number of atoms (nodes)
N_EDGES = 64     # number of edges
FILTERS = 32     # num_filters   (edge-feature width, lin1 input)
HIDDEN = 32      # hidden_channels (node-feature width, lin1/lin2 output)
LN2 = math.log(2.0)

_VMEM = pl.BlockSpec(memory_space=pltpu.MemorySpace.VMEM)


def _ssp(x):
    # ShiftedSoftplus: softplus(x) - log(2), numerically stable form.
    return jnp.maximum(x, 0.0) + jnp.log(1.0 + jnp.exp(-jnp.abs(x))) - LN2


# --------------------------------- kernel -------------------------------------
def update_v_kernel(v_ref, e_ref, dst_ref, w1_ref, b1_ref, w2_ref, b2_ref, out_ref):
    n = v_ref.shape[0]           # nodes
    e_cnt = e_ref.shape[0]       # edges

    # scatter_sum(e, dst) as an MXU matmul against a one-hot selection matrix:
    #   sel[node, edge] = 1  iff  dst[edge] == node
    dst = dst_ref[...]                                                  # [1, E] int32
    node_iota = jax.lax.broadcasted_iota(jnp.int32, (n, e_cnt), 0)      # [N, E]
    sel = (jnp.broadcast_to(dst, (n, e_cnt)) == node_iota).astype(jnp.float32)
    agg = jnp.dot(sel, e_ref[...], preferred_element_type=jnp.float32)  # [N, F]

    # lin1 -> ShiftedSoftplus -> lin2 -> residual
    h = _ssp(jnp.dot(agg, w1_ref[...], preferred_element_type=jnp.float32)
             + b1_ref[...])                                             # [N, H]
    out = jnp.dot(h, w2_ref[...], preferred_element_type=jnp.float32) + b2_ref[...]
    out_ref[...] = v_ref[...] + out


# --------------------------------- wrapper ------------------------------------
def update_v_forward(v, e, edge_index, params):
    """v: [N, H], e: [E, F], edge_index: [2, E] (row 1 = destination index)."""
    dst = edge_index[1].astype(jnp.int32).reshape(1, -1)                # [1, E]
    # PyTorch Linear stores weight as [out, in]; pre-transpose to [in, out].
    w1 = jnp.transpose(params["lin1_w"])                                # [F, H]
    b1 = params["lin1_b"].reshape(1, -1)                                # [1, H]
    w2 = jnp.transpose(params["lin2_w"])                                # [H, H]
    b2 = params["lin2_b"].reshape(1, -1)                                # [1, H]

    fused = pl.pallas_call(
        update_v_kernel,
        out_shape=jax.ShapeDtypeStruct(v.shape, jnp.float32),
        in_specs=[_VMEM] * 7,
        out_specs=_VMEM,
    )
    # TODO(synk): the dense one-hot scatter is sized [N, E]; for very large
    # graphs this would need an edge-tiled grid with scalar-prefetched dst
    # offsets instead of a single VMEM block.
    return fused(v.astype(jnp.float32), e.astype(jnp.float32), dst, w1, b1, w2, b2)


# ------------------------------ numpy reference --------------------------------
def _ssp_np(x):
    return np.maximum(x, 0.0) + np.log1p(np.exp(-np.abs(x))) - LN2


def reference_forward(v, e, edge_index, params):
    v = np.asarray(v, np.float32)
    e = np.asarray(e, np.float32)
    dst = np.asarray(edge_index)[1]
    agg = np.zeros((v.shape[0], e.shape[1]), np.float32)
    np.add.at(agg, dst, e)                                              # scatter-sum
    w1 = np.asarray(params["lin1_w"]).T
    b1 = np.asarray(params["lin1_b"]).reshape(1, -1)
    w2 = np.asarray(params["lin2_w"]).T
    b2 = np.asarray(params["lin2_b"]).reshape(1, -1)
    out = _ssp_np(agg @ w1 + b1) @ w2 + b2
    return v + out


# ----------------------------------- main ---------------------------------------
def _xavier(key, fan_out, fan_in):
    # torch.nn.init.xavier_uniform_ on a [out, in] Linear weight.
    bound = math.sqrt(6.0 / (fan_in + fan_out))
    return jax.random.uniform(key, (fan_out, fan_in), jnp.float32, -bound, bound)


if __name__ == "__main__":
    key = jax.random.PRNGKey(0)
    k_v, k_e, k_idx, k_w1, k_w2 = jax.random.split(key, 5)

    # Parameters (bias filled with 0 per reset_parameters()).
    params = dict(
        lin1_w=_xavier(k_w1, HIDDEN, FILTERS),            # [H, F]
        lin1_b=jnp.zeros((HIDDEN,), jnp.float32),
        lin2_w=_xavier(k_w2, HIDDEN, HIDDEN),              # [H, H]
        lin2_b=jnp.zeros((HIDDEN,), jnp.float32),
    )

    # Inputs: node features v, edge features e, edge_index (row 1 = dst node).
    v = jax.random.normal(k_v, (N_NODES, HIDDEN), jnp.float32)
    e = jax.random.normal(k_e, (N_EDGES, FILTERS), jnp.float32)
    edge_index = jax.random.randint(k_idx, (2, N_EDGES), 0, N_NODES, jnp.int32)

    v_new = update_v_forward(v, e, edge_index, params)
    v_new = jax.block_until_ready(v_new)

    v_ref = reference_forward(v, e, edge_index, params)
    assert np.all(np.isfinite(np.asarray(v_new)))
    assert np.allclose(np.asarray(v_new), v_ref, rtol=1e-4, atol=1e-4)
    print("KERNEL_OK")
</pallas_src>

<mosaic_0001>
module attributes {stable_mosaic.version = 11 : i64} {
  func.func @update_v_kernel(%arg0: memref<16x32xf32, #tpu.memory_space<vmem>>, %arg1: memref<64x32xf32, #tpu.memory_space<vmem>>, %arg2: memref<1x64xi32, #tpu.memory_space<vmem>>, %arg3: memref<32x32xf32, #tpu.memory_space<vmem>>, %arg4: memref<1x32xf32, #tpu.memory_space<vmem>>, %arg5: memref<32x32xf32, #tpu.memory_space<vmem>>, %arg6: memref<1x32xf32, #tpu.memory_space<vmem>>, %arg7: memref<16x32xf32, #tpu.memory_space<vmem>>) attributes {dimension_semantics = [], scalar_prefetch = 0 : i64, scratch_operands = 0 : i64, tpu.core_type = #tpu.core_type<tc>} {
    %c0 = arith.constant 0 : index
    %c0_0 = arith.constant 0 : index
    %0 = vector.load %arg2[%c0, %c0_0] : memref<1x64xi32, #tpu.memory_space<vmem>>, vector<1x64xi32>
    %1 = tpu.iota {dimensions = array<i32: 0>} : vector<16x64xi32>
    %2 = vector.shape_cast %0 : vector<1x64xi32> to vector<1x64xi32>
    %3 = vector.broadcast %2 : vector<1x64xi32> to vector<16x64xi32>
    %4 = arith.cmpi eq, %3, %1 : vector<16x64xi32>
    %5 = arith.extui %4 : vector<16x64xi1> to vector<16x64xi32>
    %6 = arith.sitofp %5 : vector<16x64xi32> to vector<16x64xf32>
    %c0_1 = arith.constant 0 : index
    %c0_2 = arith.constant 0 : index
    %7 = vector.load %arg1[%c0_1, %c0_2] : memref<64x32xf32, #tpu.memory_space<vmem>>, vector<64x32xf32>
    %cst = arith.constant dense<0.000000e+00> : vector<16x32xf32>
    %8 = tpu.matmul %6, %7, %cst {dimension_numbers = #tpu.dot_dimension_numbers<[1], [0], [0], [1], [0, 0, 1, 1], [], []>} : vector<16x64xf32>, vector<64x32xf32>, vector<16x32xf32> -> vector<16x32xf32>
    %c0_3 = arith.constant 0 : index
    %c0_4 = arith.constant 0 : index
    %9 = vector.load %arg3[%c0_3, %c0_4] : memref<32x32xf32, #tpu.memory_space<vmem>>, vector<32x32xf32>
    %cst_5 = arith.constant dense<0.000000e+00> : vector<16x32xf32>
    %10 = tpu.matmul %8, %9, %cst_5 {dimension_numbers = #tpu.dot_dimension_numbers<[1], [0], [0], [1], [0, 0, 1, 1], [], []>} : vector<16x32xf32>, vector<32x32xf32>, vector<16x32xf32> -> vector<16x32xf32>
    %c0_6 = arith.constant 0 : index
    %c0_7 = arith.constant 0 : index
    %11 = vector.load %arg4[%c0_6, %c0_7] : memref<1x32xf32, #tpu.memory_space<vmem>>, vector<1x32xf32>
    %12 = vector.broadcast %11 : vector<1x32xf32> to vector<16x32xf32>
    %13 = arith.addf %10, %12 : vector<16x32xf32>
    %cst_8 = arith.constant 0.000000e+00 : f32
    %14 = vector.broadcast %cst_8 : f32 to vector<16x32xf32>
    %15 = arith.maximumf %13, %14 : vector<16x32xf32>
    %16 = math.absf %13 : vector<16x32xf32>
    %cst_9 = arith.constant 0.000000e+00 : f32
    %17 = vector.broadcast %cst_9 : f32 to vector<16x32xf32>
    %18 = arith.subf %17, %16 : vector<16x32xf32>
    %19 = math.exp %18 : vector<16x32xf32>
    %cst_10 = arith.constant 1.000000e+00 : f32
    %20 = vector.broadcast %cst_10 : f32 to vector<16x32xf32>
    %21 = arith.addf %20, %19 : vector<16x32xf32>
    %22 = math.log %21 : vector<16x32xf32>
    %23 = arith.addf %15, %22 : vector<16x32xf32>
    %cst_11 = arith.constant 0.693147182 : f32
    %24 = vector.broadcast %cst_11 : f32 to vector<16x32xf32>
    %25 = arith.subf %23, %24 : vector<16x32xf32>
    %c0_12 = arith.constant 0 : index
    %c0_13 = arith.constant 0 : index
    %26 = vector.load %arg5[%c0_12, %c0_13] : memref<32x32xf32, #tpu.memory_space<vmem>>, vector<32x32xf32>
    %cst_14 = arith.constant dense<0.000000e+00> : vector<16x32xf32>
    %27 = tpu.matmul %25, %26, %cst_14 {dimension_numbers = #tpu.dot_dimension_numbers<[1], [0], [0], [1], [0, 0, 1, 1], [], []>} : vector<16x32xf32>, vector<32x32xf32>, vector<16x32xf32> -> vector<16x32xf32>
    %c0_15 = arith.constant 0 : index
    %c0_16 = arith.constant 0 : index
    %28 = vector.load %arg6[%c0_15, %c0_16] : memref<1x32xf32, #tpu.memory_space<vmem>>, vector<1x32xf32>
    %29 = vector.broadcast %28 : vector<1x32xf32> to vector<16x32xf32>
    %30 = arith.addf %27, %29 : vector<16x32xf32>
    %c0_17 = arith.constant 0 : index
    %c0_18 = arith.constant 0 : index
    %31 = vector.load %arg0[%c0_17, %c0_18] : memref<16x32xf32, #tpu.memory_space<vmem>>, vector<16x32xf32>
    %32 = arith.addf %31, %30 : vector<16x32xf32>
    %c0_19 = arith.constant 0 : index
    %c0_20 = arith.constant 0 : index
    %33 = vector.load %arg7[%c0_19, %c0_20] : memref<16x32xf32, #tpu.memory_space<vmem>>, vector<16x32xf32>
    tpu.vector_store %arg7[%c0_19, %c0_20], %32 {strides = array<i32>} : memref<16x32xf32, #tpu.memory_space<vmem>>, vector<16x32xf32>,
    return
  }
}

</mosaic_0001>

<llo_original>
// kernel: tpu_custom_call.1
$region0: #{tpu_custom_call.1}
  #allocation0 [shape = 'u32[]', space=smem, size = 0x4, offset = 0x4, fixed_abs, tag = 'smem constant byte address 0x4 - core index']
  #allocation1 [shape = 'u32[72,128]{1,0:T(1,128)}', space=vmem, size = 0x9000, scoped, tag = 'internal scratch']
  %s0 = inlined_call_operand.vmem [shape: f32[16,32], index: 0, kind: input, shape index: {}]
  %s1 = inlined_call_operand.vmem [shape: f32[64,32], index: 1, kind: input, shape index: {}]
  %s2 = inlined_call_operand.vmem [shape: s32[1,64], index: 2, kind: input, shape index: {}]
  %s3 = inlined_call_operand.vmem [shape: f32[32,32], index: 3, kind: input, shape index: {}]
  %s4 = inlined_call_operand.vmem [shape: f32[1,32], index: 4, kind: input, shape index: {}]
  %s5 = inlined_call_operand.vmem [shape: f32[32,32], index: 5, kind: input, shape index: {}]
  %s6 = inlined_call_operand.vmem [shape: f32[1,32], index: 6, kind: input, shape index: {}]
  %s7 = inlined_call_operand.hbm [shape: f32[16,32], index: 7, kind: output, shape index: {}]
  %s8 = sld [smem:[#allocation0]]
  $region38: #{tpu_custom_call.1} parent=0
    _
  %s10 = ssub.s32 1, %s8
  %s11 = scalar_select 0, %s10, %s8
  $region1: #{tpu_custom_call.1} parent=0
    #allocation2 [shape = 'u8[8192]{0}', space=vmem, size = 0x2000, scoped, tag = 'output window, operand 0, single buffered']
    #allocation3 [shape = 's32[1]{0}', space=sflag, size = 0x4, scoped, tag = 'scoped memory for tpu_custom_call.1']
    %12 = vsyncpa [#allocation3], 0
    // Predicated region
    $region2: #{tpu_custom_call.1} parent=1 // pred_check
      _
    $region3: #{tpu_custom_call.1} parent=1 // pred_check_branch
      %14 = sbr.rel (0) target = $region5
    $region4: #{tpu_custom_call.1} parent=1 // pred_region
      _
    $region5: #{tpu_custom_call.1} parent=1 // pred_fallthru
      _
    // Predicated region
    $region6: #{tpu_custom_call.1} parent=1 // pred_check
      _
    $region7: #{tpu_custom_call.1} parent=1 // pred_check_branch
      %16 = sbr.rel (0) target = $region9
    $region8: #{tpu_custom_call.1} parent=1 // pred_region
      _
    $region9: #{tpu_custom_call.1} parent=1 // pred_fallthru
      _
    // Predicated region
    $region10: #{tpu_custom_call.1} parent=1 // pred_check
      _
    $region11: #{tpu_custom_call.1} parent=1 // pred_check_branch
      %18 = sbr.rel (0) target = $region13
    $region12: #{tpu_custom_call.1} parent=1 // pred_region
      _
    $region13: #{tpu_custom_call.1} parent=1 // pred_fallthru
      _
    // Predicated region
    $region14: #{tpu_custom_call.1} parent=1 // pred_check
      _
    $region15: #{tpu_custom_call.1} parent=1 // pred_check_branch
      %20 = sbr.rel (0) target = $region17
    $region16: #{tpu_custom_call.1} parent=1 // pred_region
      _
    $region17: #{tpu_custom_call.1} parent=1 // pred_fallthru
      _
    // Predicated region
    $region18: #{tpu_custom_call.1} parent=1 // pred_check
      _
    $region19: #{tpu_custom_call.1} parent=1 // pred_check_branch
      %22 = sbr.rel (0) target = $region21
    $region20: #{tpu_custom_call.1} parent=1 // pred_region
      _
    $region21: #{tpu_custom_call.1} parent=1 // pred_fallthru
      _
    // Predicated region
    $region22: #{tpu_custom_call.1} parent=1 // pred_check
      _
    $region23: #{tpu_custom_call.1} parent=1 // pred_check_branch
      %24 = sbr.rel (0) target = $region25
    $region24: #{tpu_custom_call.1} parent=1 // pred_region
      _
    $region25: #{tpu_custom_call.1} parent=1 // pred_fallthru
      _
    // Predicated region
    $region26: #{tpu_custom_call.1} parent=1 // pred_check
      _
    $region27: #{tpu_custom_call.1} parent=1 // pred_check_branch
      %26 = sbr.rel (0) target = $region29
    $region28: #{tpu_custom_call.1} parent=1 // pred_region
      _
    $region29: #{tpu_custom_call.1} parent=1 // pred_fallthru
      _
    %v27 = vld [vmem:[%s2] sm:$0x1]
    %v28 = vlaneseq
    %v29 = vshrl.u32 %v28, 7
    %v30 = vadd.s32 %v29, 8
    %v31 = vperm.slane %v27, 0
    %vm32 = vcmp.eq.s32.totalorder %v31, %v29
    %vm33 = vcmp.eq.s32.totalorder %v31, %v30
    %v34 = vsel %vm32, 1, 0
    %v35 = vsel %vm33, 1, 0
    %v36 = vcvt.s32.f32 %v34
    %v37 = vcvt.s32.f32 %v35
    %v38 = vld [vmem:[%s1] sm:$0xff]
    %v39 = vld [vmem:[%s1 + $0x8] sm:$0xff]
    %v40 = vld [vmem:[%s1 + $0x10] sm:$0xff]
    %v41 = vld [vmem:[%s1 + $0x18] sm:$0xff]
    %v42 = vld [vmem:[%s1 + $0x20] sm:$0xff]
    %v43 = vld [vmem:[%s1 + $0x28] sm:$0xff]
    %v44 = vld [vmem:[%s1 + $0x30] sm:$0xff]
    %v45 = vld [vmem:[%s1 + $0x38] sm:$0xff]
    %vm46 = vcmask 523264
    %v48 = vsel %vm46, %v36, 0
    %v51 = vsel %vm46, %v37, 0
    %53 = vmatpush.msra.mxu0 0.0
    %54 = vmatpush.msra.mxu0 0.0
    %55 = vmatpush.msra.mxu0 0.0
    %56 = vmatpush.msra.mxu0 0.0
    %57 = vmatpush.msra.mxu0 0.0
    %58 = vmatpush.msra.mxu0 0.0
    %59 = vmatpush.msra.mxu0 0.0
    %60 = vmatpush.msra.mxu0 0.0
    %61 = vmatpush.msra.mxu0 %v45
    %62 = vmatpush.msra.mxu0 %v44
    %63 = vmatpush.msra.mxu0 %v43
    %64 = vmatpush.msra.mxu0 %v42
    %65 = vmatpush.msra.mxu0 %v41
    %66 = vmatpush.msra.mxu0 %v40
    %67 = vmatpush.msra.mxu0 %v39
    %68 = vmatpush.msra.mxu0 %v38
    %69 = vmatmul.f32.gmra.mxu0 %v48
    %v70 = vpop.f32.mrf.mxu0
    %v71 = vadd.f32 0.0, %v70
    %72 = vmatmul.f32.gmra.mxu0 %v51
    %v73 = vpop.f32.mrf.mxu0
    %v74 = vadd.f32 0.0, %v73
    %75 = vdwg.mxu0
    %v76 = vld [vmem:[%s3] sm:$0xff]
    %v77 = vld [vmem:[%s3 + $0x8] sm:$0xff]
    %v78 = vld [vmem:[%s3 + $0x10] sm:$0xff]
    %v79 = vld [vmem:[%s3 + $0x18] sm:$0xff]
    %v80 = vld [vmem:[%s4] sm:$0x1]
    %v82 = vperm.slane %v80, 0
    %vm84 = vcmask 261120
    %v86 = vsel %vm84, %v71, 0
    %v89 = vsel %vm84, %v74, 0
    %91 = vmatpush.msra.mxu0 0.0
    %92 = vmatpush.msra.mxu0 0.0
    %93 = vmatpush.msra.mxu0 0.0
    %94 = vmatpush.msra.mxu0 0.0
    %95 = vmatpush.msra.mxu0 0.0
    %96 = vmatpush.msra.mxu0 0.0
    %97 = vmatpush.msra.mxu0 0.0
    %98 = vmatpush.msra.mxu0 0.0
    %99 = vmatpush.msra.mxu0 0.0
    %100 = vmatpush.msra.mxu0 0.0
    %101 = vmatpush.msra.mxu0 0.0
    %102 = vmatpush.msra.mxu0 0.0
    %103 = vmatpush.msra.mxu0 %v79
    %104 = vmatpush.msra.mxu0 %v78
    %105 = vmatpush.msra.mxu0 %v77
    %106 = vmatpush.msra.mxu0 %v76
    %107 = vmatmul.f32.gmra.mxu0 %v86
    %v108 = vpop.f32.mrf.mxu0
    %v109 = vadd.f32 %v82, %v108
    %110 = vmatmul.f32.gmra.mxu0 %v89
    %v111 = vpop.f32.mrf.mxu0
    %v112 = vadd.f32 %v82, %v111
    %113 = vdwg.mxu0
    %v114 = vmax.f32 %v109, 0.0
    %v115 = vmax.f32 %v112, 0.0
    %v116 = vand.u32 2147483647, %v109
    %v117 = vand.u32 2147483647, %v112
    %v118 = vsub.f32 0.0, %v116
    %v119 = vsub.f32 0.0, %v117
    %v120 = vmul.f32 %v118, 1.442695
    %v121 = vpow.pop %v120
    %v122 = vmul.f32 %v119, 1.442695
    %v123 = vpow.pop %v122
    %v124 = vadd.f32 %v121, 1.0
    %v125 = vadd.f32 %v123, 1.0
    %v126 = vlog2.pop %v124
    %v127 = vmul.f32 %v126, 0.6931472
    %v128 = vlog2.pop %v125
    %v129 = vmul.f32 %v128, 0.6931472
    %v130 = vadd.f32 %v114, %v127
    %v131 = vadd.f32 %v115, %v129
    %v132 = vsub.f32 %v130, 0.6931472
    %v133 = vsub.f32 %v131, 0.6931472
    %v134 = vld [vmem:[%s5] sm:$0xff]
    %v135 = vld [vmem:[%s5 + $0x8] sm:$0xff]
    %v136 = vld [vmem:[%s5 + $0x10] sm:$0xff]
    %v137 = vld [vmem:[%s5 + $0x18] sm:$0xff]
    %v138 = vld [vmem:[%s6] sm:$0x1]
    %v140 = vperm.slane %v138, 0
    %v143 = vsel %vm84, %v132, 0
    %v146 = vsel %vm84, %v133, 0
    %148 = vmatpush.msra.mxu0 0.0
    %149 = vmatpush.msra.mxu0 0.0
    %150 = vmatpush.msra.mxu0 0.0
    %151 = vmatpush.msra.mxu0 0.0
    %152 = vmatpush.msra.mxu0 0.0
    %153 = vmatpush.msra.mxu0 0.0
    %154 = vmatpush.msra.mxu0 0.0
    %155 = vmatpush.msra.mxu0 0.0
    %156 = vmatpush.msra.mxu0 0.0
    %157 = vmatpush.msra.mxu0 0.0
    %158 = vmatpush.msra.mxu0 0.0
    %159 = vmatpush.msra.mxu0 0.0
    %160 = vmatpush.msra.mxu0 %v137
    %161 = vmatpush.msra.mxu0 %v136
    %162 = vmatpush.msra.mxu0 %v135
    %163 = vmatpush.msra.mxu0 %v134
    %164 = vmatmul.f32.gmra.mxu0 %v143
    %v165 = vpop.f32.mrf.mxu0
    %v166 = vadd.f32 %v140, %v165
    %167 = vmatmul.f32.gmra.mxu0 %v146
    %v168 = vpop.f32.mrf.mxu0
    %v169 = vadd.f32 %v140, %v168
    %170 = vdwg.mxu0
    %v171 = vld [vmem:[%s0] sm:$0xff]
    %v172 = vld [vmem:[%s0 + $0x8] sm:$0xff]
    %v173 = vadd.f32 %v171, %v166
    %v174 = vadd.f32 %v172, %v169
    %175 = vst.msk [vmem:[#allocation2] sm:$0xff] %vm84, %v173
    %176 = vst.msk [vmem:[#allocation2 + $0x8] sm:$0xff] %vm84, %v174
    // Predicated region
    $region30: #{tpu_custom_call.1} parent=1 // pred_check
      _
    $region31: #{tpu_custom_call.1} parent=1 // pred_check_branch
      %178 = sbr.rel (0) target = $region33
    $region32: #{tpu_custom_call.1} parent=1 // pred_region
      %180 = vsyncadd [#allocation3], 0
      %s181 = sshll.u32 [#allocation2], 4
      %s182 = int_to_ptr.vmem [resolvable:$true] %s181
      %s183 = sshll.u32 %s7, 4
      %s184 = int_to_ptr.hbm [resolvable:$true] %s183
      %189 = dma.vmem_to_hbm [thread:$0]  %s182, 256, %s184, [#allocation3], 128, 128, 8
    $region33: #{tpu_custom_call.1} parent=1 // pred_fallthru
      _
    // Predicated region
    $region34: #{tpu_custom_call.1} parent=1 // pred_check
      _
    $region35: #{tpu_custom_call.1} parent=1 // pred_check_branch
      %191 = sbr.rel (0) target = $region37
    $region36: #{tpu_custom_call.1} parent=1 // pred_region
      %193 = dma.done [#allocation3], 256
    $region37: #{tpu_custom_call.1} parent=1 // pred_fallthru
      _
    %194 = vsyncpa [#allocation3], 1

</llo_original>
